<compile_context>
chip_gen: v5e
topology: v5e:2x2
jax: 0.10.0
libtpu: 0.0.40
codegen_flags: <defaults>
</compile_context>

<pallas_src>
from functools import partial

import jax
import jax.numpy as jnp
from jax.experimental import pallas as pl
from jax.experimental.pallas import tpu as pltpu


# ----------------------------------------------------------------------------
# Generation-aware VMEM budgeting
# ----------------------------------------------------------------------------
def _vmem_capacity_bytes():
    try:
        cap = int(getattr(pltpu.get_tpu_info(), "vmem_capacity_bytes"))
        if cap > 0:
            return cap
    except Exception:
        pass
    return 64 * 1024 * 1024  # conservative fallback (v7x physical VMEM)


_VMEM_CAP = _vmem_capacity_bytes()
# Explicit scoped-VMEM limit for the kernel (default scoped limit is much lower).
_VMEM_LIMIT = min(int(0.85 * _VMEM_CAP), 110 * 2**20)
# Total-residency budget we size tiles against:
#   ~ 2 inputs x 2 pipeline buffers + ~8 (TB,C) f32 elementwise temporaries  ≈ 12 slabs
_RESID_BUDGET = min(int(0.60 * _VMEM_CAP), 96 * 2**20)


def _tile_rows(batch, num_classes):
    """Pick the batch-tile size: biggest slab that keeps total VMEM residency
    within the generation-aware budget (48-ish MiB on v7x, ~96 MiB v5e/v6e)."""
    c_pad = ((num_classes + 127) // 128) * 128        # VMEM lane padding to 128
    slab_budget = max(_RESID_BUDGET // 12, 256 * 1024)
    tb = slab_budget // (4 * c_pad)
    tb = max(16, (tb // 16) * 16)                     # 16-row multiple (bf16-safe)
    return batch if tb >= batch else tb


# ----------------------------------------------------------------------------
# Kernel: one batch tile -> per-tile CE / KL partial sums (lane-dense output)
# ----------------------------------------------------------------------------
def _distill_tile_kernel(params_ref, student_ref, teacher_ref, labels_ref,
                         part_ref, *, true_b):
    i = pl.program_id(0)

    tau = params_ref[0]
    inv_tau = 1.0 / tau

    s = student_ref[...].astype(jnp.float32)      # (TB, C) student logits
    t = teacher_ref[...].astype(jnp.float32)      # (TB, C) teacher logits
    labels = labels_ref[...]                      # (TB, 1) int32

    tb, c = s.shape

    # ---- student log-sum-exp at temperature 1 and tau (shared row max) -----
    s_max = jnp.max(s, axis=-1, keepdims=True)
    s_shift = s - s_max
    s_lse = jnp.log(jnp.sum(jnp.exp(s_shift), axis=-1, keepdims=True))
    st_shift = s_shift * inv_tau                  # max(s/tau) == max(s)/tau
    st_lse = jnp.log(jnp.sum(jnp.exp(st_shift), axis=-1, keepdims=True))

    # ---- cross entropy per row: lse - s_shift[label] (no log_p slab) --------
    class_idx = jax.lax.broadcasted_iota(jnp.int32, (tb, c), 1)
    sel = jnp.sum(jnp.where(class_idx == labels, s_shift, 0.0),
                  axis=-1, keepdims=True)
    ce_row = s_lse - sel                          # (TB, 1)

    # ---- KL per row (no p_t / diff slabs) -----------------------------------
    # KL_row = sum_c p_t * (log p_t - log q)
    #        = [sum_c tt_exp*(tt_shift - st_shift)] / tt_sum + (st_lse - log(tt_sum))
    tt = t * inv_tau
    tt_shift = tt - jnp.max(tt, axis=-1, keepdims=True)
    tt_exp = jnp.exp(tt_shift)
    tt_sum = jnp.sum(tt_exp, axis=-1, keepdims=True)
    kl_num = jnp.sum(tt_exp * (tt_shift - st_shift), axis=-1, keepdims=True)
    kl_row = kl_num * pl.reciprocal(tt_sum, approx=True) \
        + (st_lse - jnp.log(tt_sum))              # (TB, 1)

    # ---- mask rows past the true batch (ragged last tile, no wrapper pad) ---
    row = jax.lax.broadcasted_iota(jnp.int32, (tb, 1), 0)
    valid = row < (true_b - i * tb)
    ce_part = jnp.sum(jnp.where(valid, ce_row, 0.0))
    kl_part = jnp.sum(jnp.where(valid, kl_row, 0.0))

    # ---- lane-dense per-tile partial output: [0,0] = CE, [0,1] = KL ---------
    lane = jax.lax.broadcasted_iota(jnp.int32, (8, 128), 1)
    sub = jax.lax.broadcasted_iota(jnp.int32, (8, 128), 0)
    tile = jnp.where((sub == 0) & (lane == 0), ce_part,
                     jnp.where((sub == 0) & (lane == 1), kl_part, 0.0))
    part_ref[...] = tile


# ----------------------------------------------------------------------------
# Jitted forward (tb static): pallas_call + tiny JAX-side reduce / combine
# ----------------------------------------------------------------------------
@partial(jax.jit, static_argnames=("tb",))
def _distill_forward(student, teacher, labels, tau_alpha, *, tb):
    B, C = student.shape
    grid_n = pl.cdiv(B, tb)
    labels2d = labels.astype(jnp.int32).reshape(B, 1)

    kernel = partial(_distill_tile_kernel, true_b=B)

    bytes_accessed = (student.size * student.dtype.itemsize
                      + teacher.size * teacher.dtype.itemsize
                      + labels2d.size * 4
                      + grid_n * 8 * 128 * 4)
    cost = pl.CostEstimate(flops=int(12 * B * C),
                           transcendentals=int(3 * B * C),
                           bytes_accessed=int(bytes_accessed))

    partials = pl.pallas_call(
        kernel,
        out_shape=jax.ShapeDtypeStruct((grid_n, 8, 128), jnp.float32),
        grid=(grid_n,),
        in_specs=[
            pl.BlockSpec(memory_space=pltpu.SMEM),          # [tau, alpha]
            pl.BlockSpec((tb, C), lambda i: (i, 0)),        # student logits tile
            pl.BlockSpec((tb, C), lambda i: (i, 0)),        # teacher logits tile
            pl.BlockSpec((tb, 1), lambda i: (i, 0)),        # labels tile
        ],
        out_specs=pl.BlockSpec((None, 8, 128), lambda i: (i, 0, 0)),
        compiler_params=pltpu.CompilerParams(
            dimension_semantics=("parallel",),              # both TCs on v7x
            vmem_limit_bytes=_VMEM_LIMIT),
        cost_estimate=cost,
    )(tau_alpha, student, teacher, labels2d)

    tau = tau_alpha[0]
    alpha = tau_alpha[1]
    inv_b = jnp.float32(1.0 / B)
    ce = jnp.sum(partials[:, 0, 0]) * inv_b
    kl = jnp.sum(partials[:, 0, 1]) * inv_b * tau * tau
    loss = (1.0 - alpha) * ce + alpha * kl
    return loss, ce, kl


# ----------------------------------------------------------------------------
# Module wrapper (parity with the PyTorch DistillationLoss)
# ----------------------------------------------------------------------------
class DistillationLossPallas:
    """JAX / Pallas-TPU equivalent of the PyTorch DistillationLoss module."""

    def __init__(self, tau, alpha, total_epoch):
        self.tau = float(tau)
        self.alphas = [float(a) for a in jnp.linspace(alpha, 0.0, total_epoch)]
        self.alpha = float(alpha)
        self.last_epoch = -1

    def step(self, epoch=None):
        if epoch is None:
            self.last_epoch += 1
        else:
            self.last_epoch = epoch
        self.alpha = self.alphas[self.last_epoch]

    def __call__(self, student_outputs, labels, teacher_outputs, batch_tile=None):
        B, C = student_outputs.shape

        tb = int(batch_tile) if batch_tile is not None else _tile_rows(B, C)
        if tb >= B:
            tb = B
        else:
            tb = max(16, (tb // 16) * 16)
            if tb >= B:
                tb = B

        # Runtime scalars -> alpha changes per epoch do not trigger recompiles.
        tau_alpha = jnp.array([self.tau, self.alpha], dtype=jnp.float32)
        return _distill_forward(student_outputs, teacher_outputs, labels,
                                tau_alpha, tb=tb)


# ----------------------------------------------------------------------------
# Pure-JAX reference (PyTorch semantics) + self-test
# ----------------------------------------------------------------------------
def _reference(student, labels, teacher, tau, alpha):
    log_p = jax.nn.log_softmax(student, axis=1)
    ce = -jnp.mean(jnp.take_along_axis(log_p, labels[:, None], axis=1))
    log_q = jax.nn.log_softmax(student / tau, axis=1)
    p_t = jax.nn.softmax(teacher / tau, axis=1)
    kl = jnp.sum(p_t * (jnp.log(p_t) - log_q)) / student.shape[0]
    dl = kl * tau * tau
    return (1.0 - alpha) * ce + alpha * dl, ce, dl


if __name__ == "__main__":
    key = jax.random.PRNGKey(0)
    k1, k2, k3 = jax.random.split(key, 3)

    # ---- test 1: single-tile path ------------------------------------------
    B, C = 8, 32
    student = jax.random.normal(k1, (B, C), dtype=jnp.float32) * 2.0
    teacher = jax.random.normal(k2, (B, C), dtype=jnp.float32) * 2.0
    labels = jax.random.randint(k3, (B,), 0, C, dtype=jnp.int32)

    crit = DistillationLossPallas(tau=4.0, alpha=0.7, total_epoch=10)

    loss, student_loss, distill_loss = crit(student, labels, teacher)
    jax.block_until_ready((loss, student_loss, distill_loss))

    ref_loss, ref_sl, ref_dl = _reference(student, labels, teacher,
                                          crit.tau, crit.alpha)
    assert jnp.allclose(loss, ref_loss, rtol=1e-3, atol=1e-5), (loss, ref_loss)
    assert jnp.allclose(student_loss, ref_sl, rtol=1e-3, atol=1e-5), (student_loss, ref_sl)
    assert jnp.allclose(distill_loss, ref_dl, rtol=1e-3, atol=1e-5), (distill_loss, ref_dl)

    # ---- test 2: multi-tile "parallel" grid with ragged last tile (no pad) ---
    k4, k5, k6 = jax.random.split(jax.random.PRNGKey(1), 3)
    B2 = 20
    student2 = jax.random.normal(k4, (B2, C), dtype=jnp.float32) * 2.0
    teacher2 = jax.random.normal(k5, (B2, C), dtype=jnp.float32) * 2.0
    labels2 = jax.random.randint(k6, (B2,), 0, C, dtype=jnp.int32)

    crit.step()   # alpha changes -> runtime scalar, no recompile
    loss2, sl2, dl2 = crit(student2, labels2, teacher2, batch_tile=16)
    jax.block_until_ready((loss2, sl2, dl2))

    ref_loss2, ref_sl2, ref_dl2 = _reference(student2, labels2, teacher2,
                                             crit.tau, crit.alpha)
    assert jnp.allclose(loss2, ref_loss2, rtol=1e-3, atol=1e-5), (loss2, ref_loss2)
    assert jnp.allclose(sl2, ref_sl2, rtol=1e-3, atol=1e-5), (sl2, ref_sl2)
    assert jnp.allclose(dl2, ref_dl2, rtol=1e-3, atol=1e-5), (dl2, ref_dl2)

    print("KERNEL_OK")
</pallas_src>

<mosaic_0001>
module attributes {stable_mosaic.version = 11 : i64} {
  func.func @_distill_tile_kernel(%arg0: i32, %arg1: memref<2xf32, #tpu.memory_space<smem>>, %arg2: memref<8x32xf32, #tpu.memory_space<vmem>>, %arg3: memref<8x32xf32, #tpu.memory_space<vmem>>, %arg4: memref<8x1xi32, #tpu.memory_space<vmem>>, %arg5: memref<1x8x128xf32, #tpu.memory_space<vmem>>) attributes {dimension_semantics = [#tpu.dimension_semantics<parallel>], iteration_bounds = array<i64: 1>, scalar_prefetch = 0 : i64, scratch_operands = 0 : i64, tpu.core_type = #tpu.core_type<tc>, window_params = [{transform_indices = @transform_0, window_bounds = array<i64: 2>}, {transform_indices = @transform_1, window_bounds = array<i64: 8, 32>}, {transform_indices = @transform_2, window_bounds = array<i64: 8, 32>}, {transform_indices = @transform_3, window_bounds = array<i64: 8, 1>}, {transform_indices = @transform_4, window_bounds = array<i64: 1, 8, 128>}]} {
    %c0 = arith.constant 0 : index
    %0 = memref.load %arg1[%c0] : memref<2xf32, #tpu.memory_space<smem>>
    %cst = arith.constant 1.000000e+00 : f32
    %1 = arith.divf %cst, %0 : f32
    %c0_0 = arith.constant 0 : index
    %c0_1 = arith.constant 0 : index
    %2 = vector.load %arg2[%c0_0, %c0_1] : memref<8x32xf32, #tpu.memory_space<vmem>>, vector<8x32xf32>
    %c0_2 = arith.constant 0 : index
    %c0_3 = arith.constant 0 : index
    %3 = vector.load %arg3[%c0_2, %c0_3] : memref<8x32xf32, #tpu.memory_space<vmem>>, vector<8x32xf32>
    %c0_4 = arith.constant 0 : index
    %c0_5 = arith.constant 0 : index
    %4 = vector.load %arg4[%c0_4, %c0_5] : memref<8x1xi32, #tpu.memory_space<vmem>>, vector<8x1xi32>
    %cst_6 = arith.constant dense<0xFF800000> : vector<8xf32>
    %5 = vector.multi_reduction <maximumf>, %2, %cst_6 [1] : vector<8x32xf32> to vector<8xf32>
    %6 = vector.shape_cast %5 : vector<8xf32> to vector<8x1xf32>
    %7 = vector.broadcast %6 : vector<8x1xf32> to vector<8x32xf32>
    %8 = arith.subf %2, %7 : vector<8x32xf32>
    %9 = math.exp %8 : vector<8x32xf32>
    %cst_7 = arith.constant dense<0.000000e+00> : vector<8xf32>
    %10 = vector.multi_reduction <add>, %9, %cst_7 [1] : vector<8x32xf32> to vector<8xf32>
    %11 = vector.shape_cast %10 : vector<8xf32> to vector<8x1xf32>
    %12 = math.log %11 : vector<8x1xf32>
    %13 = vector.broadcast %1 : f32 to vector<8x32xf32>
    %14 = arith.mulf %8, %13 : vector<8x32xf32>
    %15 = math.exp %14 : vector<8x32xf32>
    %cst_8 = arith.constant dense<0.000000e+00> : vector<8xf32>
    %16 = vector.multi_reduction <add>, %15, %cst_8 [1] : vector<8x32xf32> to vector<8xf32>
    %17 = vector.shape_cast %16 : vector<8xf32> to vector<8x1xf32>
    %18 = math.log %17 : vector<8x1xf32>
    %19 = tpu.iota {dimensions = array<i32: 1>} : vector<8x32xi32>
    %20 = vector.broadcast %4 : vector<8x1xi32> to vector<8x32xi32>
    %21 = arith.cmpi eq, %19, %20 : vector<8x32xi32>
    %cst_9 = arith.constant 0.000000e+00 : f32
    %22 = vector.broadcast %cst_9 : f32 to vector<8x32xf32>
    %23 = arith.select %21, %8, %22 : vector<8x32xi1>, vector<8x32xf32>
    %cst_10 = arith.constant dense<0.000000e+00> : vector<8xf32>
    %24 = vector.multi_reduction <add>, %23, %cst_10 [1] : vector<8x32xf32> to vector<8xf32>
    %25 = vector.shape_cast %24 : vector<8xf32> to vector<8x1xf32>
    %26 = arith.subf %12, %25 : vector<8x1xf32>
    %27 = vector.broadcast %1 : f32 to vector<8x32xf32>
    %28 = arith.mulf %3, %27 : vector<8x32xf32>
    %cst_11 = arith.constant dense<0xFF800000> : vector<8xf32>
    %29 = vector.multi_reduction <maximumf>, %28, %cst_11 [1] : vector<8x32xf32> to vector<8xf32>
    %30 = vector.shape_cast %29 : vector<8xf32> to vector<8x1xf32>
    %31 = vector.broadcast %30 : vector<8x1xf32> to vector<8x32xf32>
    %32 = arith.subf %28, %31 : vector<8x32xf32>
    %33 = math.exp %32 : vector<8x32xf32>
    %cst_12 = arith.constant dense<0.000000e+00> : vector<8xf32>
    %34 = vector.multi_reduction <add>, %33, %cst_12 [1] : vector<8x32xf32> to vector<8xf32>
    %35 = vector.shape_cast %34 : vector<8xf32> to vector<8x1xf32>
    %36 = arith.subf %32, %14 : vector<8x32xf32>
    %37 = arith.mulf %33, %36 : vector<8x32xf32>
    %cst_13 = arith.constant dense<0.000000e+00> : vector<8xf32>
    %38 = vector.multi_reduction <add>, %37, %cst_13 [1] : vector<8x32xf32> to vector<8xf32>
    %39 = vector.shape_cast %38 : vector<8xf32> to vector<8x1xf32>
    %40 = tpu.reciprocal %35 {approx = true} : vector<8x1xf32> -> vector<8x1xf32>
    %41 = arith.mulf %39, %40 : vector<8x1xf32>
    %42 = math.log %35 : vector<8x1xf32>
    %43 = arith.subf %18, %42 : vector<8x1xf32>
    %44 = arith.addf %41, %43 : vector<8x1xf32>
    %45 = tpu.iota {dimensions = array<i32: 0>} : vector<8x1xi32>
    %c8_i32 = arith.constant 8 : i32
    %46 = arith.muli %arg0, %c8_i32 : i32
    %c8_i32_14 = arith.constant 8 : i32
    %47 = arith.subi %c8_i32_14, %46 : i32
    %48 = vector.broadcast %47 : i32 to vector<8x1xi32>
    %49 = arith.cmpi slt, %45, %48 : vector<8x1xi32>
    %cst_15 = arith.constant 0.000000e+00 : f32
    %50 = vector.broadcast %cst_15 : f32 to vector<8x1xf32>
    %51 = arith.select %49, %26, %50 : vector<8x1xi1>, vector<8x1xf32>
    %52 = vector.shape_cast %51 : vector<8x1xf32> to vector<1x8x1xf32>
    %cst_16 = arith.constant dense<0.000000e+00> : vector<1xf32>
    %53 = vector.multi_reduction <add>, %52, %cst_16 [1, 2] : vector<1x8x1xf32> to vector<1xf32>
    %54 = vector.shape_cast %53 : vector<1xf32> to vector<1x1x1xf32>
    %55 = vector.extract %54[0, 0, 0] : f32 from vector<1x1x1xf32>
    %cst_17 = arith.constant 0.000000e+00 : f32
    %56 = vector.broadcast %cst_17 : f32 to vector<8x1xf32>
    %57 = arith.select %49, %44, %56 : vector<8x1xi1>, vector<8x1xf32>
    %58 = vector.shape_cast %57 : vector<8x1xf32> to vector<1x8x1xf32>
    %cst_18 = arith.constant dense<0.000000e+00> : vector<1xf32>
    %59 = vector.multi_reduction <add>, %58, %cst_18 [1, 2] : vector<1x8x1xf32> to vector<1xf32>
    %60 = vector.shape_cast %59 : vector<1xf32> to vector<1x1x1xf32>
    %61 = vector.extract %60[0, 0, 0] : f32 from vector<1x1x1xf32>
    %62 = tpu.iota {dimensions = array<i32: 1>} : vector<8x128xi32>
    %63 = tpu.iota {dimensions = array<i32: 0>} : vector<8x128xi32>
    %c0_i32 = arith.constant 0 : i32
    %64 = vector.broadcast %c0_i32 : i32 to vector<8x128xi32>
    %65 = arith.cmpi eq, %63, %64 : vector<8x128xi32>
    %c0_i32_19 = arith.constant 0 : i32
    %66 = vector.broadcast %c0_i32_19 : i32 to vector<8x128xi32>
    %67 = arith.cmpi eq, %62, %66 : vector<8x128xi32>
    %68 = arith.andi %65, %67 : vector<8x128xi1>
    %c0_i32_20 = arith.constant 0 : i32
    %69 = vector.broadcast %c0_i32_20 : i32 to vector<8x128xi32>
    %70 = arith.cmpi eq, %63, %69 : vector<8x128xi32>
    %c1_i32 = arith.constant 1 : i32
    %71 = vector.broadcast %c1_i32 : i32 to vector<8x128xi32>
    %72 = arith.cmpi eq, %62, %71 : vector<8x128xi32>
    %73 = arith.andi %70, %72 : vector<8x128xi1>
    %cst_21 = arith.constant 0.000000e+00 : f32
    %74 = vector.broadcast %61 : f32 to vector<8x128xf32>
    %75 = vector.broadcast %cst_21 : f32 to vector<8x128xf32>
    %76 = arith.select %73, %74, %75 : vector<8x128xi1>, vector<8x128xf32>
    %77 = vector.broadcast %55 : f32 to vector<8x128xf32>
    %78 = arith.select %68, %77, %76 : vector<8x128xi1>, vector<8x128xf32>
    %c0_22 = arith.constant 0 : index
    %c0_23 = arith.constant 0 : index
    %c0_24 = arith.constant 0 : index
    %79 = vector.load %arg5[%c0_22, %c0_23, %c0_24] : memref<1x8x128xf32, #tpu.memory_space<vmem>>, vector<1x8x128xf32>
    %80 = vector.shape_cast %79 : vector<1x8x128xf32> to vector<8x128xf32>
    %81 = vector.shape_cast %78 : vector<8x128xf32> to vector<1x8x128xf32>
    tpu.vector_store %arg5[%c0_22, %c0_23, %c0_24], %81 {strides = array<i32>} : memref<1x8x128xf32, #tpu.memory_space<vmem>>, vector<1x8x128xf32>,
    return
  }
  func.func @transform_0(%arg0: i32) -> i32 {
    %c0_i32 = arith.constant 0 : i32
    %c0_i32_0 = arith.constant 0 : i32
    return %c0_i32 : i32
  }
  func.func @transform_1(%arg0: i32) -> (i32, i32) {
    %c0_i32 = arith.constant 0 : i32
    %c0_i32_0 = arith.constant 0 : i32
    return %arg0, %c0_i32 : i32, i32
  }
  func.func @transform_2(%arg0: i32) -> (i32, i32) {
    %c0_i32 = arith.constant 0 : i32
    %c0_i32_0 = arith.constant 0 : i32
    return %arg0, %c0_i32 : i32, i32
  }
  func.func @transform_3(%arg0: i32) -> (i32, i32) {
    %c0_i32 = arith.constant 0 : i32
    %c0_i32_0 = arith.constant 0 : i32
    return %arg0, %c0_i32 : i32, i32
  }
  func.func @transform_4(%arg0: i32) -> (i32, i32, i32) {
    %c0_i32 = arith.constant 0 : i32
    %c0_i32_0 = arith.constant 0 : i32
    %c0_i32_1 = arith.constant 0 : i32
    return %arg0, %c0_i32, %c0_i32_0 : i32, i32, i32
  }
}

</mosaic_0001>

<llo_original>
// kernel: _distill_forward.1
$region0: #{_distill_forward.1}
  #allocation0 [shape = 'u32[]', space=smem, size = 0x4, offset = 0x4, fixed_abs, tag = 'smem constant byte address 0x4 - core index']
  #allocation1 [shape = 'u32[72,128]{1,0:T(1,128)}', space=vmem, size = 0x9000, scoped, tag = 'internal scratch']
  %s0 = inlined_call_operand.vmem [shape: f32[2], index: 0, kind: input, shape index: {}]
  %s1 = inlined_call_operand.vmem [shape: f32[8,32], index: 1, kind: input, shape index: {}]
  %s2 = inlined_call_operand.vmem [shape: f32[8,32], index: 2, kind: input, shape index: {}]
  %s3 = inlined_call_operand.vmem [shape: s32[8,1], index: 3, kind: input, shape index: {}]
  %s4 = inlined_call_operand.vmem [shape: f32[1,8,128], index: 4, kind: output, shape index: {}]
  %s5 = sld [smem:[#allocation0]]
  $region30: #{_distill_forward.1} parent=0
    _
  %s7 = ssub.s32 1, %s5
  %s8 = scalar_select 0, %s7, %s5
  $region1: #{_distill_forward.1} parent=0
    #allocation2 [shape = 'u8[512]{0}', space=smem, size = 0x200, scoped, tag = 'input window, operand 0, single buffered']
    #allocation3 [shape = 's32[1]{0}', space=sflag, size = 0x4, scoped, tag = 'scoped memory for _distill_forward.1']
    %9 = vsyncpa [#allocation3], 0
    // Predicated region
    $region2: #{_distill_forward.1} parent=1 // pred_check
      _
    $region3: #{_distill_forward.1} parent=1 // pred_check_branch
      %11 = sbr.rel (0) target = $region5
    $region4: #{_distill_forward.1} parent=1 // pred_region
      %13 = vsyncadd [#allocation3], 0
      %s15 = sshll.u32 %s0, 4
      %s16 = int_to_ptr.vmem [resolvable:$true] %s15
      %18 = dma.vmem_to_smem %s16, 16, [#allocation2], [#allocation3]
    $region5: #{_distill_forward.1} parent=1 // pred_fallthru
      _
    // Predicated region
    $region6: #{_distill_forward.1} parent=1 // pred_check
      _
    $region7: #{_distill_forward.1} parent=1 // pred_check_branch
      %20 = sbr.rel (0) target = $region9
    $region8: #{_distill_forward.1} parent=1 // pred_region
      _
    $region9: #{_distill_forward.1} parent=1 // pred_fallthru
      _
    // Predicated region
    $region10: #{_distill_forward.1} parent=1 // pred_check
      _
    $region11: #{_distill_forward.1} parent=1 // pred_check_branch
      %22 = sbr.rel (0) target = $region13
    $region12: #{_distill_forward.1} parent=1 // pred_region
      _
    $region13: #{_distill_forward.1} parent=1 // pred_fallthru
      _
    // Predicated region
    $region14: #{_distill_forward.1} parent=1 // pred_check
      _
    $region15: #{_distill_forward.1} parent=1 // pred_check_branch
      %24 = sbr.rel (0) target = $region17
    $region16: #{_distill_forward.1} parent=1 // pred_region
      _
    $region17: #{_distill_forward.1} parent=1 // pred_fallthru
      _
    // Predicated region
    $region18: #{_distill_forward.1} parent=1 // pred_check
      _
    $region19: #{_distill_forward.1} parent=1 // pred_check_branch
      %26 = sbr.rel (0) target = $region21
    $region20: #{_distill_forward.1} parent=1 // pred_region
      %28 = dma.done [#allocation3], 16
    $region21: #{_distill_forward.1} parent=1 // pred_fallthru
      _
    %29 = sfence
    %s30 = sld [smem:[#allocation2]]
    %v31 = vstv %s30
    %v32 = vrcp.pop %v31
    %v33 = vmul.f32 %v31, %v32
    %v34 = vsub.f32 1.0, %v33
    %v35 = vmul.f32 %v32, %v34
    %v36 = vadd.f32 %v32, %v35
    %vm37 = vweird.f32 %v31
    %vm38 = vweird.f32 %v32
    %vm39 = vmor %vm37, %vm38
    %v40 = vsel %vm39, %v32, %v36
    %v41 = vand.u32 2147483647, %v31
    %vm42 = vcmp.eq.f32.partialorder %v41, 8.507059e+37
    %v43 = vand.u32 %v31, 2147483648
    %v44 = vor.u32 1.1754944e-38, %v43
    %v45 = vsel %vm42, %v44, %v40
    %s46 = vtos %v45
    %v47 = vld [vmem:[%s1] sm:$0xff]
    %v48 = vld [vmem:[%s2] sm:$0xff]
    %v49 = vld [vmem:[%s3] sm:$0xff]
    %vm50 = vcmask 261120
    %v51 = vsel %vm50, %v47, -inf
    %52 = vmax.xlane.f32.xlu0 %v51
    %v53 = vpop.xlane.xlu0 %52
    %v54 = vsub.f32 %v47, %v53
    %v55 = vmul.f32 %v54, 1.442695
    %v56 = vpow.pop %v55
    %v57 = vsel %vm50, %v56, 0.0
    %58 = vadd.xlane.f32.xlu0 %v57
    %v59 = vpop.xlane.xlu0 %58
    %v60 = vlog2.pop %v59
    %v61 = vmul.f32 %v60, 0.6931472
    %v62 = vstv %s46
    %v63 = vmul.f32 %v54, %v62
    %v64 = vmul.f32 %v63, 1.442695
    %v65 = vpow.pop %v64
    %v66 = vsel %vm50, %v65, 0.0
    %67 = vadd.xlane.f32.xlu0 %v66
    %v68 = vpop.xlane.xlu0 %67
    %v69 = vlog2.pop %v68
    %v70 = vmul.f32 %v69, 0.6931472
    %v71 = vlaneseq
    %v72 = vand.u32 %v71, 127
    %73 = vset.pattern.permute.xlu0 0
    %74 = vperm.xlu0 %73, %v49
    %v75 = vpop.permute.xlu0 %74
    %vm76 = vcmp.eq.s32.totalorder %v72, %v75
    %v77 = vsel %vm76, %v54, 0.0
    %v78 = vsel %vm50, %v77, 0.0
    %79 = vadd.xlane.f32.xlu0 %v78
    %v80 = vpop.xlane.xlu0 %79
    %v81 = vsub.f32 %v61, %v80
    %v82 = vmul.f32 %v48, %v62
    %v83 = vsel %vm50, %v82, -inf
    %84 = vmax.xlane.f32.xlu0 %v83
    %v85 = vpop.xlane.xlu0 %84
    %v86 = vsub.f32 %v82, %v85
    %v87 = vmul.f32 %v86, 1.442695
    %v88 = vpow.pop %v87
    %v89 = vsel %vm50, %v88, 0.0
    %90 = vadd.xlane.f32.xlu0 %v89
    %v91 = vpop.xlane.xlu0 %90
    %v92 = vsub.f32 %v86, %v63
    %v93 = vmul.f32 %v88, %v92
    %v94 = vsel %vm50, %v93, 0.0
    %95 = vadd.xlane.f32.xlu0 %v94
    %v96 = vpop.xlane.xlu0 %95
    %v97 = vrcp.pop %v91
    %v98 = vmul.f32 %v96, %v97
    %v99 = vlog2.pop %v91
    %v100 = vmul.f32 %v99, 0.6931472
    %v101 = vsub.f32 %v70, %v100
    %v102 = vadd.f32 %v98, %v101
    %v103 = vlaneseq
    %v104 = vshrl.u32 %v103, 7
    %s105 = smul.u32 0, 8
    %s106 = ssub.s32 8, %s105
    %v107 = vstv %s106
    %vm108 = vcmp.lt.s32.totalorder %v104, %v107
    %v109 = vsel %vm108, %v81, 0.0
    %vm110 = vcmask 7168
    %v111 = vsel %vm110, %v109, 0.0
    %112 = vadd.xlane.f32.xlu0 %v111
    %v113 = vpop.xlane.xlu0 %112
    %v114 = vrot.slane %v113, 4
    %v115 = vadd.f32 %v113, %v114
    %v116 = vrot.slane %v115, 2
    %v117 = vadd.f32 %v115, %v116
    %v118 = vrot.slane %v117, 1
    %v119 = vadd.f32 %v117, %v118
    %s120 = vtos %v119
    %v121 = vsel %vm108, %v102, 0.0
    %v122 = vsel %vm110, %v121, 0.0
    %123 = vadd.xlane.f32.xlu0 %v122
    %v124 = vpop.xlane.xlu0 %123
    %v125 = vrot.slane %v124, 4
    %v126 = vadd.f32 %v124, %v125
    %v127 = vrot.slane %v126, 2
    %v128 = vadd.f32 %v126, %v127
    %v129 = vrot.slane %v128, 1
    %v130 = vadd.f32 %v128, %v129
    %s131 = vtos %v130
    %vm132 = vcmp.eq.s32.totalorder %v104, 0
    %vm133 = vcmp.eq.s32.totalorder %v72, 0
    %vm134 = vmand %vm132, %vm133
    %vm135 = vcmp.eq.s32.totalorder %v72, 1
    %vm136 = vmand %vm132, %vm135
    %v137 = vstv %s131
    %v138 = vsel %vm136, %v137, 0.0
    %v139 = vstv %s120
    %v140 = vsel %vm134, %v139, %v138
    %141 = vst [vmem:[%s4] sm:$0xff] %v140
    // Predicated region
    $region22: #{_distill_forward.1} parent=1 // pred_check
      _
    $region23: #{_distill_forward.1} parent=1 // pred_check_branch
      %143 = sbr.rel (0) target = $region25
    $region24: #{_distill_forward.1} parent=1 // pred_region
      _
    $region25: #{_distill_forward.1} parent=1 // pred_fallthru
      _
    // Predicated region
    $region26: #{_distill_forward.1} parent=1 // pred_check
      _
    $region27: #{_distill_forward.1} parent=1 // pred_check_branch
      %145 = sbr.rel (0) target = $region29
    $region28: #{_distill_forward.1} parent=1 // pred_region
      _
    $region29: #{_distill_forward.1} parent=1 // pred_fallthru
      _
    %146 = vsyncpa [#allocation3], 1

</llo_original>
